<compile_context>
chip_gen: v7x
topology: tpu7x:2x2x1
jax: 0.10.0
libtpu: 0.0.40
codegen_flags: <defaults>
</compile_context>

<pallas_src>
import jax
import jax.numpy as jnp
from jax.experimental import pallas as pl
from jax.experimental.pallas import tpu as pltpu

_LANE = 128
_SUBLANE = 8


def _skeleton_aware_kernel(pc_ref, sk_ref, w1_ref, b1_ref, w2_ref, b2_ref,
                           out_ref, beff_ref):
    # --- skeleton branch: once per batch (first N-tile only) ---------------
    @pl.when(pl.program_id(1) == 0)
    def _():
        sk_feat = jnp.maximum(
            jnp.dot(sk_ref[...], w1_ref[...],
                    preferred_element_type=jnp.float32) + b1_ref[...], 0.0)   # (M, H)
        sk_mean = jnp.mean(sk_feat, axis=0, keepdims=True)                    # (1, H)
        # Effective bias: sk_mean @ W2 + b2  (tiny (1,H)x(H,Dp) matmul).
        beff_ref[...] = jnp.dot(sk_mean, w2_ref[...],
                                preferred_element_type=jnp.float32) + b2_ref[...]

    # --- point-cloud branch: per N-tile ------------------------------------
    pc_feat = jnp.maximum(
        jnp.dot(pc_ref[...], w1_ref[...],
                preferred_element_type=jnp.float32) + b1_ref[...], 0.0)       # (TN, H)
    out = jnp.dot(pc_feat, w2_ref[...],
                  preferred_element_type=jnp.float32) + beff_ref[...]         # (TN, Dp)
    out_ref[...] = out.astype(out_ref.dtype)


def skeleton_aware_forward(point_cloud, skeleton, w1, b1, w2, b2, *, tn=None):
    """point_cloud: (B, N, D_in), skeleton: (B, M, D_in).
    w1: (D_in, H), b1: (H,), w2: (H, D_out), b2: (D_out,)."""
    B, N, D_in = point_cloud.shape
    _, M, _ = skeleton.shape
    H = w1.shape[1]
    D_out = w2.shape[1]
    out_dtype = point_cloud.dtype

    # Lane-dense output: pad the output feature dim (and w2/b2) to a multiple of 128.
    Dp = max(_LANE, -(-D_out // _LANE) * _LANE)
    w2_p = jnp.zeros((H, Dp), w2.dtype).at[:, :D_out].set(w2)
    b2_p = jnp.zeros((1, Dp), b2.dtype).at[0, :D_out].set(b2)
    b1_2d = b1.reshape(1, H)

    # Row-tile size: multiple of 8 sublanes, capped at 256 (MXU-sized M tiles).
    if tn is None:
        tn = 256 if N >= 256 else -(-N // _SUBLANE) * _SUBLANE
    N_pad = -(-N // tn) * tn
    if N_pad != N:
        point_cloud = jnp.pad(point_cloud, ((0, 0), (0, N_pad - N), (0, 0)))
    n_tiles = N_pad // tn

    # VMEM budget estimate (double-buffered blocks + f32 intermediates), sized
    # conservatively so the same tile works on v7x's 64 MiB VMEM per TC.
    blk_bytes = 4 * (tn * D_in + tn * Dp + M * D_in + D_in * H + H + H * Dp + Dp)
    interm_bytes = 4 * (tn * H + M * H + Dp)
    vmem_limit = int(min(max(2 * blk_bytes + interm_bytes + (2 << 20), 8 << 20),
                         64 << 20))

    flops = (2 * B * M * D_in * H            # skeleton fc1 (once per batch)
             + 2 * B * H * Dp                # b_eff matmul (once per batch)
             + 2 * B * N_pad * D_in * H      # point-cloud fc1
             + 2 * B * N_pad * H * Dp)       # point-cloud fc2
    bytes_accessed = 4 * (B * N_pad * D_in + B * M * D_in + D_in * H + H
                          + H * Dp + Dp + B * N_pad * Dp)

    out_padded = pl.pallas_call(
        _skeleton_aware_kernel,
        out_shape=jax.ShapeDtypeStruct((B, N_pad, Dp), out_dtype),
        grid_spec=pltpu.PrefetchScalarGridSpec(
            num_scalar_prefetch=0,
            grid=(B, n_tiles),
            in_specs=[
                pl.BlockSpec((pl.Squeezed(), tn, D_in), lambda b, j: (b, j, 0)),
                pl.BlockSpec((pl.Squeezed(), M, D_in), lambda b, j: (b, 0, 0)),
                pl.BlockSpec((D_in, H), lambda b, j: (0, 0)),
                pl.BlockSpec((1, H), lambda b, j: (0, 0)),
                pl.BlockSpec((H, Dp), lambda b, j: (0, 0)),
                pl.BlockSpec((1, Dp), lambda b, j: (0, 0)),
            ],
            out_specs=pl.BlockSpec((pl.Squeezed(), tn, Dp), lambda b, j: (b, j, 0)),
            scratch_shapes=[pltpu.VMEM((1, Dp), jnp.float32)],
        ),
        compiler_params=pltpu.CompilerParams(
            dimension_semantics=("parallel", "arbitrary"),
            vmem_limit_bytes=vmem_limit,
        ),
        cost_estimate=pl.CostEstimate(
            flops=flops, transcendentals=0, bytes_accessed=bytes_accessed),
    )(point_cloud, skeleton, w1, b1_2d, w2_p, b2_p)

    # Strip row/lane padding.
    return out_padded[:, :N, :D_out]


def _reference_forward(point_cloud, skeleton, w1, b1, w2, b2):
    pc_feat = jax.nn.relu(point_cloud @ w1 + b1)
    sk_feat = jax.nn.relu(skeleton @ w1 + b1)
    sk_mean = jnp.mean(sk_feat, axis=1, keepdims=True)
    return (pc_feat + sk_mean) @ w2 + b2


if __name__ == "__main__":
    # Small shapes consistent with the module's forward.
    B, N, M = 2, 16, 8          # batch, point-cloud points, skeleton joints
    D_in, H, D_out = 8, 32, 16  # input_dim, hidden_dim, output_dim

    key = jax.random.PRNGKey(0)
    k_pc, k_sk, k_w1, k_b1, k_w2, k_b2 = jax.random.split(key, 6)

    point_cloud = jax.random.normal(k_pc, (B, N, D_in), dtype=jnp.float32)
    skeleton = jax.random.normal(k_sk, (B, M, D_in), dtype=jnp.float32)

    # Deterministic parameter init (nn.Linear-style uniform bounds).
    bound1 = 1.0 / (D_in ** 0.5)
    w1 = jax.random.uniform(k_w1, (D_in, H), jnp.float32, -bound1, bound1)
    b1 = jax.random.uniform(k_b1, (H,), jnp.float32, -bound1, bound1)
    bound2 = 1.0 / (H ** 0.5)
    w2 = jax.random.uniform(k_w2, (H, D_out), jnp.float32, -bound2, bound2)
    b2 = jax.random.uniform(k_b2, (D_out,), jnp.float32, -bound2, bound2)

    out = skeleton_aware_forward(point_cloud, skeleton, w1, b1, w2, b2)
    out = jax.block_until_ready(out)

    ref = _reference_forward(point_cloud, skeleton, w1, b1, w2, b2)
    assert out.shape == (B, N, D_out)
    assert jnp.allclose(out, ref, atol=1e-4, rtol=1e-4), float(
        jnp.max(jnp.abs(out - ref)))

    print("KERNEL_OK")
</pallas_src>

<mosaic_0001>
module attributes {stable_mosaic.version = 11 : i64} {
  func.func @_skeleton_aware_kernel(%arg0: i32, %arg1: i32, %arg2: memref<1x16x8xf32, #tpu.memory_space<vmem>>, %arg3: memref<1x8x8xf32, #tpu.memory_space<vmem>>, %arg4: memref<8x32xf32, #tpu.memory_space<vmem>>, %arg5: memref<1x32xf32, #tpu.memory_space<vmem>>, %arg6: memref<32x128xf32, #tpu.memory_space<vmem>>, %arg7: memref<1x128xf32, #tpu.memory_space<vmem>>, %arg8: memref<1x16x128xf32, #tpu.memory_space<vmem>>, %arg9: memref<1x128xf32, #tpu.memory_space<vmem>>) attributes {dimension_semantics = [#tpu.dimension_semantics<parallel>, #tpu.dimension_semantics<arbitrary>], iteration_bounds = array<i64: 2, 1>, scalar_prefetch = 0 : i64, scratch_operands = 1 : i64, tpu.core_type = #tpu.core_type<tc>, window_params = [{transform_indices = @transform_0, window_bounds = array<i64: 1, 16, 8>}, {transform_indices = @transform_1, window_bounds = array<i64: 1, 8, 8>}, {pipeline_mode = #tpu.pipeline_mode<synchronous>, transform_indices = @transform_2, window_bounds = array<i64: 8, 32>}, {pipeline_mode = #tpu.pipeline_mode<synchronous>, transform_indices = @transform_3, window_bounds = array<i64: 1, 32>}, {pipeline_mode = #tpu.pipeline_mode<synchronous>, transform_indices = @transform_4, window_bounds = array<i64: 32, 128>}, {pipeline_mode = #tpu.pipeline_mode<synchronous>, transform_indices = @transform_5, window_bounds = array<i64: 1, 128>}, {transform_indices = @transform_6, window_bounds = array<i64: 1, 16, 128>}]} {
    %c0_i32 = arith.constant 0 : i32
    %0 = arith.cmpi eq, %arg1, %c0_i32 : i32
    %1 = arith.extui %0 : i1 to i32
    %c0_i32_0 = arith.constant 0 : i32
    %2 = arith.cmpi ne, %1, %c0_i32_0 : i32
    scf.if %2 {
      %c0_16 = arith.constant 0 : index
      %c0_17 = arith.constant 0 : index
      %c0_18 = arith.constant 0 : index
      %20 = vector.load %arg3[%c0_16, %c0_17, %c0_18] : memref<1x8x8xf32, #tpu.memory_space<vmem>>, vector<1x8x8xf32>
      %21 = vector.shape_cast %20 : vector<1x8x8xf32> to vector<8x8xf32>
      %c0_19 = arith.constant 0 : index
      %c0_20 = arith.constant 0 : index
      %22 = vector.load %arg4[%c0_19, %c0_20] : memref<8x32xf32, #tpu.memory_space<vmem>>, vector<8x32xf32>
      %cst_21 = arith.constant dense<0.000000e+00> : vector<8x32xf32>
      %23 = tpu.matmul %21, %22, %cst_21 {dimension_numbers = #tpu.dot_dimension_numbers<[1], [0], [0], [1], [0, 0, 1, 1], [], []>} : vector<8x8xf32>, vector<8x32xf32>, vector<8x32xf32> -> vector<8x32xf32>
      %c0_22 = arith.constant 0 : index
      %c0_23 = arith.constant 0 : index
      %24 = vector.load %arg5[%c0_22, %c0_23] : memref<1x32xf32, #tpu.memory_space<vmem>>, vector<1x32xf32>
      %25 = vector.broadcast %24 : vector<1x32xf32> to vector<8x32xf32>
      %26 = arith.addf %23, %25 : vector<8x32xf32>
      %cst_24 = arith.constant 0.000000e+00 : f32
      %27 = vector.broadcast %cst_24 : f32 to vector<8x32xf32>
      %28 = arith.maximumf %26, %27 : vector<8x32xf32>
      %cst_25 = arith.constant dense<0.000000e+00> : vector<32xf32>
      %29 = vector.multi_reduction <add>, %28, %cst_25 [0] : vector<8x32xf32> to vector<32xf32>
      %30 = vector.shape_cast %29 : vector<32xf32> to vector<1x32xf32>
      %cst_26 = arith.constant 8.000000e+00 : f32
      %31 = vector.broadcast %cst_26 : f32 to vector<1x32xf32>
      %32 = arith.divf %30, %31 : vector<1x32xf32>
      %c0_27 = arith.constant 0 : index
      %c0_28 = arith.constant 0 : index
      %33 = vector.load %arg6[%c0_27, %c0_28] : memref<32x128xf32, #tpu.memory_space<vmem>>, vector<32x128xf32>
      %cst_29 = arith.constant dense<0.000000e+00> : vector<1x128xf32>
      %34 = tpu.matmul %32, %33, %cst_29 {dimension_numbers = #tpu.dot_dimension_numbers<[1], [0], [0], [1], [0, 0, 1, 1], [], []>} : vector<1x32xf32>, vector<32x128xf32>, vector<1x128xf32> -> vector<1x128xf32>
      %c0_30 = arith.constant 0 : index
      %c0_31 = arith.constant 0 : index
      %35 = vector.load %arg7[%c0_30, %c0_31] : memref<1x128xf32, #tpu.memory_space<vmem>>, vector<1x128xf32>
      %36 = arith.addf %34, %35 : vector<1x128xf32>
      %c0_32 = arith.constant 0 : index
      %c0_33 = arith.constant 0 : index
      %37 = vector.load %arg9[%c0_32, %c0_33] : memref<1x128xf32, #tpu.memory_space<vmem>>, vector<1x128xf32>
      tpu.vector_store %arg9[%c0_32, %c0_33], %36 {strides = array<i32>} : memref<1x128xf32, #tpu.memory_space<vmem>>, vector<1x128xf32>,
    } else {
    }
    %c0 = arith.constant 0 : index
    %c0_1 = arith.constant 0 : index
    %c0_2 = arith.constant 0 : index
    %3 = vector.load %arg2[%c0, %c0_1, %c0_2] : memref<1x16x8xf32, #tpu.memory_space<vmem>>, vector<1x16x8xf32>
    %4 = vector.shape_cast %3 : vector<1x16x8xf32> to vector<16x8xf32>
    %c0_3 = arith.constant 0 : index
    %c0_4 = arith.constant 0 : index
    %5 = vector.load %arg4[%c0_3, %c0_4] : memref<8x32xf32, #tpu.memory_space<vmem>>, vector<8x32xf32>
    %cst = arith.constant dense<0.000000e+00> : vector<16x32xf32>
    %6 = tpu.matmul %4, %5, %cst {dimension_numbers = #tpu.dot_dimension_numbers<[1], [0], [0], [1], [0, 0, 1, 1], [], []>} : vector<16x8xf32>, vector<8x32xf32>, vector<16x32xf32> -> vector<16x32xf32>
    %c0_5 = arith.constant 0 : index
    %c0_6 = arith.constant 0 : index
    %7 = vector.load %arg5[%c0_5, %c0_6] : memref<1x32xf32, #tpu.memory_space<vmem>>, vector<1x32xf32>
    %8 = vector.broadcast %7 : vector<1x32xf32> to vector<16x32xf32>
    %9 = arith.addf %6, %8 : vector<16x32xf32>
    %cst_7 = arith.constant 0.000000e+00 : f32
    %10 = vector.broadcast %cst_7 : f32 to vector<16x32xf32>
    %11 = arith.maximumf %9, %10 : vector<16x32xf32>
    %c0_8 = arith.constant 0 : index
    %c0_9 = arith.constant 0 : index
    %12 = vector.load %arg6[%c0_8, %c0_9] : memref<32x128xf32, #tpu.memory_space<vmem>>, vector<32x128xf32>
    %cst_10 = arith.constant dense<0.000000e+00> : vector<16x128xf32>
    %13 = tpu.matmul %11, %12, %cst_10 {dimension_numbers = #tpu.dot_dimension_numbers<[1], [0], [0], [1], [0, 0, 1, 1], [], []>} : vector<16x32xf32>, vector<32x128xf32>, vector<16x128xf32> -> vector<16x128xf32>
    %c0_11 = arith.constant 0 : index
    %c0_12 = arith.constant 0 : index
    %14 = vector.load %arg9[%c0_11, %c0_12] : memref<1x128xf32, #tpu.memory_space<vmem>>, vector<1x128xf32>
    %15 = vector.broadcast %14 : vector<1x128xf32> to vector<16x128xf32>
    %16 = arith.addf %13, %15 : vector<16x128xf32>
    %c0_13 = arith.constant 0 : index
    %c0_14 = arith.constant 0 : index
    %c0_15 = arith.constant 0 : index
    %17 = vector.load %arg8[%c0_13, %c0_14, %c0_15] : memref<1x16x128xf32, #tpu.memory_space<vmem>>, vector<1x16x128xf32>
    %18 = vector.shape_cast %17 : vector<1x16x128xf32> to vector<16x128xf32>
    %19 = vector.shape_cast %16 : vector<16x128xf32> to vector<1x16x128xf32>
    tpu.vector_store %arg8[%c0_13, %c0_14, %c0_15], %19 {strides = array<i32>} : memref<1x16x128xf32, #tpu.memory_space<vmem>>, vector<1x16x128xf32>,
    return
  }
  func.func @transform_0(%arg0: i32, %arg1: i32) -> (i32, i32, i32) {
    %c0_i32 = arith.constant 0 : i32
    %c0_i32_0 = arith.constant 0 : i32
    return %arg0, %arg1, %c0_i32 : i32, i32, i32
  }
  func.func @transform_1(%arg0: i32, %arg1: i32) -> (i32, i32, i32) {
    %c0_i32 = arith.constant 0 : i32
    %c0_i32_0 = arith.constant 0 : i32
    %c0_i32_1 = arith.constant 0 : i32
    return %arg0, %c0_i32, %c0_i32_0 : i32, i32, i32
  }
  func.func @transform_2(%arg0: i32, %arg1: i32) -> (i32, i32) {
    %c0_i32 = arith.constant 0 : i32
    %c0_i32_0 = arith.constant 0 : i32
    %c0_i32_1 = arith.constant 0 : i32
    return %c0_i32, %c0_i32_0 : i32, i32
  }
  func.func @transform_3(%arg0: i32, %arg1: i32) -> (i32, i32) {
    %c0_i32 = arith.constant 0 : i32
    %c0_i32_0 = arith.constant 0 : i32
    %c0_i32_1 = arith.constant 0 : i32
    return %c0_i32, %c0_i32_0 : i32, i32
  }
  func.func @transform_4(%arg0: i32, %arg1: i32) -> (i32, i32) {
    %c0_i32 = arith.constant 0 : i32
    %c0_i32_0 = arith.constant 0 : i32
    %c0_i32_1 = arith.constant 0 : i32
    return %c0_i32, %c0_i32_0 : i32, i32
  }
  func.func @transform_5(%arg0: i32, %arg1: i32) -> (i32, i32) {
    %c0_i32 = arith.constant 0 : i32
    %c0_i32_0 = arith.constant 0 : i32
    %c0_i32_1 = arith.constant 0 : i32
    return %c0_i32, %c0_i32_0 : i32, i32
  }
  func.func @transform_6(%arg0: i32, %arg1: i32) -> (i32, i32, i32) {
    %c0_i32 = arith.constant 0 : i32
    %c0_i32_0 = arith.constant 0 : i32
    return %arg0, %arg1, %c0_i32 : i32, i32, i32
  }
}

</mosaic_0001>

<llo_original>
// kernel: tpu_custom_call.1
$region0: #{tpu_custom_call.1}
  #allocation0 [shape = 'u32[]', space=smem, size = 0x4, offset = 0x4, fixed_abs, tag = 'smem constant byte address 0x4 - core index']
  #allocation1 [shape = 'u32[144,128]{1,0:T(1,128)}', space=vmem, size = 0x12000, scoped, tag = 'internal scratch']
  #allocation2 [shape = 'f32[1,128]{1,0:T(1,128)}', space=vmem, size = 0x200, scoped, tag = 'scratch operand']
  %s0 = inlined_call_operand.vmem [shape: f32[2,16,8], index: 0, kind: input, shape index: {}]
  %s1 = inlined_call_operand.vmem [shape: f32[2,8,8], index: 1, kind: input, shape index: {}]
  %s2 = inlined_call_operand.vmem [shape: f32[8,32], index: 2, kind: input, shape index: {}]
  %s3 = inlined_call_operand.vmem [shape: f32[1,32], index: 3, kind: input, shape index: {}]
  %s4 = inlined_call_operand.vmem [shape: f32[32,128], index: 4, kind: input, shape index: {}]
  %s5 = inlined_call_operand.vmem [shape: f32[1,128], index: 5, kind: input, shape index: {}]
  %s6 = inlined_call_operand.hbm [shape: f32[2,16,128], index: 6, kind: output, shape index: {}]
  %s7 = sld [smem:[#allocation0]]
  $region61: #{tpu_custom_call.1} parent=0
    _
  %s9 = ssub.s32 1, %s7
  %s10 = scalar_select 0, %s9, %s7
  $region1: #{tpu_custom_call.1} parent=0
    #allocation3 [shape = 'u8[16384]{0}', space=vmem, size = 0x4000, scoped, tag = 'output window, operand 0']
    #allocation4 [shape = 's32[2]{0}', space=sflag, size = 0x8, scoped, tag = 'scoped memory for tpu_custom_call.1']
    %11 = vsyncpa [#allocation4], 0
    %s12 = scalar_lea.sflag [#allocation4], 1
    %13 = vsyncpa %s12, 0
    loop: start=0, step=1, limit=4
    $region2: #{tpu_custom_call.1} parent=1 // loop_pre_header
      _
    $region3: #{tpu_custom_call.1} parent=1 // loop_header
      %s15 = sphi 0, %s19
      %p16 = scmp.ge.s32.totalorder %s15, 4
      %s22 = sphi 0, %s34
      %s23 = sphi 0, %s30
      %s24 = sphi 0, %s22
      %s25 = sphi 0, %s23
      %s26 = sphi 0, %s24
      %s27 = sphi 0, %s25
      %s39 = sphi 0, %s41
      %s42 = sphi 0, %s39
      %s43 = sphi 0, %s42
      %s59 = sphi 0, %s43
      %s65 = sphi 0, %s67
      %s68 = sphi 0, %s65
      %s69 = sphi 0, %s68
      %s85 = sphi 0, %s69
      %s89 = sphi 0, %s89
      %s91 = sphi 0, %s89
      %s92 = sphi 0, %s91
      %s106 = sphi 0, %s92
      %s110 = sphi 0, %s110
      %s112 = sphi 0, %s110
      %s113 = sphi 0, %s112
      %s127 = sphi 0, %s113
      %s131 = sphi 0, %s131
      %s133 = sphi 0, %s131
      %s134 = sphi 0, %s133
      %s148 = sphi 0, %s134
      %s152 = sphi 0, %s152
      %s154 = sphi 0, %s152
      %s155 = sphi 0, %s154
      %s169 = sphi 0, %s155
      %s177 = sphi 0, %s179
      %s180 = sphi 0, %s177
      %s181 = sphi 0, %s180
      %s197 = sphi 0, %s181
    $region4: #{tpu_custom_call.1} parent=1 // loop_header_branch
      %18 = sbr.rel (%p16) target = $region8
    $region5: #{tpu_custom_call.1} parent=1 // loop_body
      %s20 = ssub.s32 %s15, 1
      %s21 = ssub.s32 %s15, 2
      %s28 = sadd.s32 1, %s23
      %p29 = scmp.ge.s32.totalorder %s28, 1
      %s30 = scalar_select %p29, 0, %s28
      %s31 = sadd.s32 1, %s22
      %s32 = scalar_select %p29, %s31, %s22
      %p33 = scmp.ge.s32.totalorder %s32, 2
      %s34 = scalar_select %p33, 0, %s32
      %s35 = ssub.s32 %s22, %s34
      %s36 = ssub.s32 %s23, %s30
      %s37 = sor.u32 %s35, %s36
      %p38 = scmp.eq.s32.totalorder %s37, 0
      %s40 = sadd.s32 %s39, 1
      %s41 = scalar_select %p38, %s39, %s40
      %p44 = pneg %p38
      %p45 = scmp.eq.s32.totalorder %s15, 1
      %p46 = por %p44, %p45
      %p47 = scmp.ne.s32.totalorder %s39, %s42
      %p48 = scmp.eq.s32.totalorder %s15, 0
      %p49 = por %p47, %p48
      %p50 = scmp.ne.s32.totalorder %s39, %s42
      %p51 = scmp.eq.s32.totalorder %s20, 1
      %p52 = por %p50, %p51
      %p53 = scmp.ne.s32.totalorder %s42, %s43
      %p54 = scmp.eq.s32.totalorder %s20, 0
      %p55 = por %p53, %p54
      %p56 = scmp.ne.s32.totalorder %s42, %s43
      %p57 = scmp.eq.s32.totalorder %s21, 1
      %p58 = por %p56, %p57
      %p60 = scmp.ne.s32.totalorder %s43, %s59
      %p61 = scmp.eq.s32.totalorder %s21, 0
      %p62 = por %p60, %p61
      %s63 = ssub.s32 %s22, %s34
      %p64 = scmp.eq.s32.totalorder %s63, 0
      %s66 = sadd.s32 %s65, 1
      %s67 = scalar_select %p64, %s65, %s66
      %p70 = pneg %p64
      %p71 = scmp.eq.s32.totalorder %s15, 1
      %p72 = por %p70, %p71
      %p73 = scmp.ne.s32.totalorder %s65, %s68
      %p74 = scmp.eq.s32.totalorder %s15, 0
      %p75 = por %p73, %p74
      %p76 = scmp.ne.s32.totalorder %s65, %s68
      %p77 = scmp.eq.s32.totalorder %s20, 1
      %p78 = por %p76, %p77
      %p79 = scmp.ne.s32.totalorder %s68, %s69
      %p80 = scmp.eq.s32.totalorder %s20, 0
      %p81 = por %p79, %p80
      %p82 = scmp.ne.s32.totalorder %s68, %s69
      %p83 = scmp.eq.s32.totalorder %s21, 1
      %p84 = por %p82, %p83
      %p86 = scmp.ne.s32.totalorder %s69, %s85
      %p87 = scmp.eq.s32.totalorder %s21, 0
      %p88 = por %p86, %p87
      %s90 = sadd.s32 %s89, 1
      %p93 = scmp.eq.s32.totalorder %s15, 1
      %p94 = scmp.ne.s32.totalorder %s89, %s91
      %p95 = scmp.eq.s32.totalorder %s15, 0
      %p96 = por %p94, %p95
      %p97 = scmp.ne.s32.totalorder %s89, %s91
      %p98 = scmp.eq.s32.totalorder %s20, 1
      %p99 = por %p97, %p98
      %p100 = scmp.ne.s32.totalorder %s91, %s92
      %p101 = scmp.eq.s32.totalorder %s20, 0
      %p102 = por %p100, %p101
      %p103 = scmp.ne.s32.totalorder %s91, %s92
      %p104 = scmp.eq.s32.totalorder %s21, 1
      %p105 = por %p103, %p104
      %p107 = scmp.ne.s32.totalorder %s92, %s106
      %p108 = scmp.eq.s32.totalorder %s21, 0
      %p109 = por %p107, %p108
      %s111 = sadd.s32 %s110, 1
      %p114 = scmp.eq.s32.totalorder %s15, 1
      %p115 = scmp.ne.s32.totalorder %s110, %s112
      %p116 = scmp.eq.s32.totalorder %s15, 0
      %p117 = por %p115, %p116
      %p118 = scmp.ne.s32.totalorder %s110, %s112
      %p119 = scmp.eq.s32.totalorder %s20, 1
      %p120 = por %p118, %p119
      %p121 = scmp.ne.s32.totalorder %s112, %s113
      %p122 = scmp.eq.s32.totalorder %s20, 0
      %p123 = por %p121, %p122
      %p124 = scmp.ne.s32.totalorder %s112, %s113
      %p125 = scmp.eq.s32.totalorder %s21, 1
      %p126 = por %p124, %p125
      %p128 = scmp.ne.s32.totalorder %s113, %s127
      %p129 = scmp.eq.s32.totalorder %s21, 0
      %p130 = por %p128, %p129
      %s132 = sadd.s32 %s131, 1
      %p135 = scmp.eq.s32.totalorder %s15, 1
      %p136 = scmp.ne.s32.totalorder %s131, %s133
      %p137 = scmp.eq.s32.totalorder %s15, 0
      %p138 = por %p136, %p137
      %p139 = scmp.ne.s32.totalorder %s131, %s133
      %p140 = scmp.eq.s32.totalorder %s20, 1
      %p141 = por %p139, %p140
      %p142 = scmp.ne.s32.totalorder %s133, %s134
      %p143 = scmp.eq.s32.totalorder %s20, 0
      %p144 = por %p142, %p143
      %p145 = scmp.ne.s32.totalorder %s133, %s134
      %p146 = scmp.eq.s32.totalorder %s21, 1
      %p147 = por %p145, %p146
      %p149 = scmp.ne.s32.totalorder %s134, %s148
      %p150 = scmp.eq.s32.totalorder %s21, 0
      %p151 = por %p149, %p150
      %s153 = sadd.s32 %s152, 1
      %p156 = scmp.eq.s32.totalorder %s15, 1
      %p157 = scmp.ne.s32.totalorder %s152, %s154
      %p158 = scmp.eq.s32.totalorder %s15, 0
      %p159 = por %p157, %p158
      %p160 = scmp.ne.s32.totalorder %s152, %s154
      %p161 = scmp.eq.s32.totalorder %s20, 1
      %p162 = por %p160, %p161
      %p163 = scmp.ne.s32.totalorder %s154, %s155
      %p164 = scmp.eq.s32.totalorder %s20, 0
      %p165 = por %p163, %p164
      %p166 = scmp.ne.s32.totalorder %s154, %s155
      %p167 = scmp.eq.s32.totalorder %s21, 1
      %p168 = por %p166, %p167
      %p170 = scmp.ne.s32.totalorder %s155, %s169
      %p171 = scmp.eq.s32.totalorder %s21, 0
      %p172 = por %p170, %p171
      %s173 = ssub.s32 %s22, %s34
      %s174 = ssub.s32 %s23, %s30
      %s175 = sor.u32 %s173, %s174
      %p176 = scmp.eq.s32.totalorder %s175, 0
      %s178 = sadd.s32 %s177, 1
      %s179 = scalar_select %p176, %s177, %s178
      %p182 = pneg %p176
      %p183 = scmp.eq.s32.totalorder %s15, 1
      %p184 = por %p182, %p183
      %p185 = scmp.ne.s32.totalorder %s177, %s180
      %p186 = scmp.eq.s32.totalorder %s15, 0
      %p187 = por %p185, %p186
      %p188 = scmp.ne.s32.totalorder %s177, %s180
      %p189 = scmp.eq.s32.totalorder %s20, 1
      %p190 = por %p188, %p189
      %p191 = scmp.ne.s32.totalorder %s180, %s181
      %p192 = scmp.eq.s32.totalorder %s20, 0
      %p193 = por %p191, %p192
      %p194 = scmp.ne.s32.totalorder %s180, %s181
      %p195 = scmp.eq.s32.totalorder %s21, 1
      %p196 = por %p194, %p195
      %p198 = scmp.ne.s32.totalorder %s181, %s197
      %p199 = scmp.eq.s32.totalorder %s21, 0
      %p200 = por %p198, %p199
      %p201 = scmp.le.s32.totalorder 1, %s15
      %p202 = scmp.lt.s32.totalorder %s15, 3
      %p203 = pnand %p201, %p202
      %p204 = pneg %p203
      // Predicated region
      $region9: #{tpu_custom_call.1} parent=5 // pred_check
        _
      $region10: #{tpu_custom_call.1} parent=5 // pred_check_branch
        %206 = sbr.rel (%p203) target = $region12
      $region11: #{tpu_custom_call.1} parent=5 // pred_region
        %s207 = ssub.s32 %s15, 1
        // Predicated region
        $region13: #{tpu_custom_call.1} parent=11 // pred_check
          %p208 = pneg %p102
        $region14: #{tpu_custom_call.1} parent=11 // pred_check_branch
          %210 = sbr.rel (%p208) target = $region16
        $region15: #{tpu_custom_call.1} parent=11 // pred_region
          _
        $region16: #{tpu_custom_call.1} parent=11 // pred_fallthru
          _
        // Predicated region
        $region17: #{tpu_custom_call.1} parent=11 // pred_check
          %p211 = pneg %p123
        $region18: #{tpu_custom_call.1} parent=11 // pred_check_branch
          %213 = sbr.rel (%p211) target = $region20
        $region19: #{tpu_custom_call.1} parent=11 // pred_region
          _
        $region20: #{tpu_custom_call.1} parent=11 // pred_fallthru
          _
        // Predicated region
        $region21: #{tpu_custom_call.1} parent=11 // pred_check
          %p214 = pneg %p144
        $region22: #{tpu_custom_call.1} parent=11 // pred_check_branch
          %216 = sbr.rel (%p214) target = $region24
        $region23: #{tpu_custom_call.1} parent=11 // pred_region
          _
        $region24: #{tpu_custom_call.1} parent=11 // pred_fallthru
          _
        // Predicated region
        $region25: #{tpu_custom_call.1} parent=11 // pred_check
          %p217 = pneg %p165
        $region26: #{tpu_custom_call.1} parent=11 // pred_check_branch
          %219 = sbr.rel (%p217) target = $region28
        $region27: #{tpu_custom_call.1} parent=11 // pred_region
          _
        $region28: #{tpu_custom_call.1} parent=11 // pred_fallthru
          _
      $region12: #{tpu_custom_call.1} parent=5 // pred_fallthru
        _
      %p220 = scmp.lt.s32.totalorder %s15, 2
      // Predicated region
      $region29: #{tpu_custom_call.1} parent=5 // pred_check
        %p221 = pneg %p220
      $region30: #{tpu_custom_call.1} parent=5 // pred_check_branch
        %223 = sbr.rel (%p221) target = $region32
      $region31: #{tpu_custom_call.1} parent=5 // pred_region
        // Predicated region
        $region33: #{tpu_custom_call.1} parent=31 // pred_check
          %p224 = pneg %p49
        $region34: #{tpu_custom_call.1} parent=31 // pred_check_branch
          %226 = sbr.rel (%p224) target = $region36
        $region35: #{tpu_custom_call.1} parent=31 // pred_region
          %s227 = smul.u32 2, %s23
          %p228 = scmp.lt.s32.totalorder %s22, 1
          %s229 = scalar_select %p228, %s22, 1
          %p230 = scmp.lt.s32.totalorder %s227, 1
          %s231 = scalar_select %p230, %s227, 1
          %s232 = smul.addr %s229, 2
          %s233 = sadd.s32 %s231, %s232
          %s234 = smul.addr %s233, 8
          %s235 = scalar_lea.vmem %s0, %s234
          %s236 = smul.u32 2, %s23
        $region36: #{tpu_custom_call.1} parent=31 // pred_fallthru
          _
        // Predicated region
        $region37: #{tpu_custom_call.1} parent=31 // pred_check
          %p237 = pneg %p75
        $region38: #{tpu_custom_call.1} parent=31 // pred_check_branch
          %239 = sbr.rel (%p237) target = $region40
        $region39: #{tpu_custom_call.1} parent=31 // pred_region
          %p240 = scmp.lt.s32.totalorder %s22, 1
          %s241 = scalar_select %p240, %s22, 1
          %s242 = smul.addr %s241, 8
          %s243 = scalar_lea.vmem %s1, %s242
        $region40: #{tpu_custom_call.1} parent=31 // pred_fallthru
          _
      $region32: #{tpu_custom_call.1} parent=5 // pred_fallthru
        _
      %p244 = scmp.le.s32.totalorder 1, %s15
      %p245 = scmp.lt.s32.totalorder %s15, 3
      %p246 = pnand %p244, %p245
      %p247 = pneg %p246
      // Predicated region
      $region41: #{tpu_custom_call.1} parent=5 // pred_check
        _
      $region42: #{tpu_custom_call.1} parent=5 // pred_check_branch
        %249 = sbr.rel (%p246) target = $region44
      $region43: #{tpu_custom_call.1} parent=5 // pred_region
        %s250 = ssub.s32 %s15, 1
        %s251 = smul.u32 2, %s25
        %p252 = scmp.lt.s32.totalorder %s24, 1
        %s253 = scalar_select %p252, %s24, 1
        %p254 = scmp.lt.s32.totalorder %s251, 1
        %s255 = scalar_select %p254, %s251, 1
        %s256 = smul.addr %s253, 2
        %s257 = sadd.s32 %s255, %s256
        %s258 = smul.addr %s257, 8
        %s259 = scalar_lea.vmem %s0, %s258
        %p260 = pneg %p55
        %p261 = pneg %p52
        %p262 = scmp.lt.s32.totalorder %s24, 1
        %s263 = scalar_select %p262, %s24, 1
        %s264 = smul.addr %s263, 8
        %s265 = scalar_lea.vmem %s1, %s264
        %p266 = pneg %p81
        %p267 = pneg %p78
        %p268 = pneg %p102
        %p269 = pneg %p99
        %p270 = pneg %p123
        %p271 = pneg %p120
        %p272 = pneg %p144
        %p273 = pneg %p141
        %p274 = pneg %p165
        %p275 = pneg %p162
        %p276 = pneg %p193
        %p277 = pneg %p190
        %s278 = sand.u32 %s180, 1
        %s279 = scalar_lea.sflag [#allocation4], %s278
        %s280 = sand.u32 %s180, 1
        %s281 = smul.addr %s280, 16
        %s282 = scalar_lea.vmem [#allocation3], %s281
        %s283 = smul.u32 2, %s25
        %p284 = scmp.lt.s32.totalorder %s24, 1
        %s285 = scalar_select %p284, %s24, 1
        %p286 = scmp.lt.s32.totalorder %s283, 1
        %s287 = scalar_select %p286, %s283, 1
        %s288 = smul.addr %s285, 2
        %s289 = sadd.s32 %s287, %s288
        %s290 = smul.addr %s289, 8
        %s291 = scalar_lea.vmem %s0, %s290
        %s292 = smul.u32 2, %s25
        %p293 = scmp.lt.s32.totalorder %s24, 1
        %s294 = scalar_select %p293, %s24, 1
        %s295 = smul.addr %s294, 8
        %s296 = scalar_lea.vmem %s1, %s295
        %s297 = smul.u32 2, %s25
        %p298 = scmp.eq.s32.totalorder %s25, 0
        // Predicated region
        $region45: #{tpu_custom_call.1} parent=43 // pred_check
          %p299 = pneg %p298
        $region46: #{tpu_custom_call.1} parent=43 // pred_check_branch
          %301 = sbr.rel (%p299) target = $region48
        $region47: #{tpu_custom_call.1} parent=43 // pred_region
          %v302 = vld [vmem:[%s296] sm:$0xff]
          %v303 = vld [vmem:[%s2] sm:$0xff]
          %v304 = vld [vmem:[%s3] sm:$0x1]
          %v306 = vlaneseq
          %v307 = vshrl.u32 %v306, 7
          %v308 = vsub.s32 0, %v307
          %v309 = vrot.slane %v304, %v308
          %vm311 = vcmask 64512
          %v313 = vsel %vm311, %v302, 0
          %315 = vmatprep.subr.mxu0 0.0
          %316 = vmatpush1.msra.mxu0 %v303
          %317 = vmatprep.subr.mxu0 0.0
          %318 = vmatpush1.msra.mxu0 0.0
          %319 = vmatprep.subr.mxu0 0.0
          %320 = vmatpush1.msra.mxu0 0.0
          %321 = vmatprep.subr.mxu0 0.0
          %322 = vmatpush1.msra.mxu0 0.0
          %323 = vmatprep.subr.mxu0 0.0
          %324 = vmatpush1.msra.mxu0 0.0
          %325 = vmatprep.subr.mxu0 0.0
          %326 = vmatpush1.msra.mxu0 0.0
          %327 = vmatprep.subr.mxu0 0.0
          %328 = vmatpush1.msra.mxu0 0.0
          %329 = vmatprep.subr.mxu0 0.0
          %330 = vmatpush1.msra.mxu0 0.0
          %331 = vmatprep.subr.mxu0 0.0
          %332 = vmatpush1.msra.mxu0 0.0
          %333 = vmatprep.subr.mxu0 0.0
          %334 = vmatpush1.msra.mxu0 0.0
          %335 = vmatprep.subr.mxu0 0.0
          %336 = vmatpush1.msra.mxu0 0.0
          %337 = vmatprep.subr.mxu0 0.0
          %338 = vmatpush1.msra.mxu0 0.0
          %339 = vmatprep.subr.mxu0 0.0
          %340 = vmatpush1.msra.mxu0 0.0
          %341 = vmatprep.subr.mxu0 0.0
          %342 = vmatpush1.msra.mxu0 0.0
          %343 = vmatprep.subr.mxu0 0.0
          %344 = vmatpush1.msra.mxu0 0.0
          %345 = vmatprep.subr.mxu0 0.0
          %346 = vmatpush1.msra.mxu0 0.0
          %347 = vmatprep.subr.mxu0 0.0
          %348 = vmatpush1.msra.mxu0 0.0
          %349 = vmatprep.subr.mxu0 0.0
          %350 = vmatpush1.msra.mxu0 0.0
          %351 = vmatprep.subr.mxu0 0.0
          %352 = vmatpush1.msra.mxu0 0.0
          %353 = vmatprep.subr.mxu0 0.0
          %354 = vmatpush1.msra.mxu0 0.0
          %355 = vmatprep.subr.mxu0 0.0
          %356 = vmatpush1.msra.mxu0 0.0
          %357 = vmatprep.subr.mxu0 0.0
          %358 = vmatpush1.msra.mxu0 0.0
          %359 = vmatprep.subr.mxu0 0.0
          %360 = vmatpush1.msra.mxu0 0.0
          %361 = vmatprep.subr.mxu0 0.0
          %362 = vmatpush1.msra.mxu0 0.0
          %363 = vmatprep.subr.mxu0 0.0
          %364 = vmatpush1.msra.mxu0 0.0
          %365 = vmatprep.subr.mxu0 0.0
          %366 = vmatpush1.msra.mxu0 0.0
          %367 = vmatprep.subr.mxu0 0.0
          %368 = vmatpush1.msra.mxu0 0.0
          %369 = vmatprep.subr.mxu0 0.0
          %370 = vmatpush1.msra.mxu0 0.0
          %371 = vmatprep.subr.mxu0 0.0
          %372 = vmatpush1.msra.mxu0 0.0
          %373 = vmatprep.subr.mxu0 0.0
          %374 = vmatpush1.msra.mxu0 0.0
          %375 = vmatprep.subr.mxu0 0.0
          %376 = vmatpush1.msra.mxu0 0.0
          %377 = vmatprep.subr.mxu0 0.0
          %378 = vmatpush1.msra.mxu0 0.0
          %379 = vmatprep.mubr.f32.mxu0 0.0
          %380 = vmatmul.mubr.f32.gmra.mrb[0].mxu0 %v313
          %v381 = vpop.f32.mrb[0].mxu0
          %v382 = vadd.f32 %v309, %v381
          %v383 = vpop.f32.mrb[0].mxu0
          %384 = vdwg.mxu0
          %v385 = vmax.f32 %v382, 0.0
          %vm386 = vcmask 261120
          %v387 = vsel %vm386, %v385, 0.0
          %v388 = vrot.slane %v387, 4
          %v389 = vadd.f32 %v387, %v388
          %v390 = vrot.slane %v389, 2
          %v391 = vadd.f32 %v389, %v390
          %v392 = vrot.slane %v391, 1
          %v393 = vadd.f32 %v391, %v392
          %v394 = vrcp.pop 8.0
          %v395 = vmul.f32 %v393, %v394
          %v396 = vld [vmem:[%s4] sm:$0xff]
          %v397 = vld [vmem:[%s4 + $0x8] sm:$0xff]
          %v398 = vld [vmem:[%s4 + $0x10] sm:$0xff]
          %v399 = vld [vmem:[%s4 + $0x18] sm:$0xff]
          %v400 = vld [vmem:[%s5] sm:$0x1]
          %v402 = vsel %vm386, %v395, 0
          %404 = vmatprep.subr.mxu0 0.0
          %405 = vmatpush1.msra.mxu0 %v396
          %406 = vmatprep.subr.mxu0 0.0
          %407 = vmatpush1.msra.mxu0 %v397
          %408 = vmatprep.subr.mxu0 0.0
          %409 = vmatpush1.msra.mxu0 %v398
          %410 = vmatprep.subr.mxu0 0.0
          %411 = vmatpush1.msra.mxu0 %v399
          %412 = vmatprep.subr.mxu0 0.0
          %413 = vmatpush1.msra.mxu0 0.0
          %414 = vmatprep.subr.mxu0 0.0
          %415 = vmatpush1.msra.mxu0 0.0
          %416 = vmatprep.subr.mxu0 0.0
          %417 = vmatpush1.msra.mxu0 0.0
          %418 = vmatprep.subr.mxu0 0.0
          %419 = vmatpush1.msra.mxu0 0.0
          %420 = vmatprep.subr.mxu0 0.0
          %421 = vmatpush1.msra.mxu0 0.0
          %422 = vmatprep.subr.mxu0 0.0
          %423 = vmatpush1.msra.mxu0 0.0
          %424 = vmatprep.subr.mxu0 0.0
          %425 = vmatpush1.msra.mxu0 0.0
          %426 = vmatprep.subr.mxu0 0.0
          %427 = vmatpush1.msra.mxu0 0.0
          %428 = vmatprep.subr.mxu0 0.0
          %429 = vmatpush1.msra.mxu0 0.0
          %430 = vmatprep.subr.mxu0 0.0
          %431 = vmatpush1.msra.mxu0 0.0
          %432 = vmatprep.subr.mxu0 0.0
          %433 = vmatpush1.msra.mxu0 0.0
          %434 = vmatprep.subr.mxu0 0.0
          %435 = vmatpush1.msra.mxu0 0.0
          %436 = vmatprep.subr.mxu0 0.0
          %437 = vmatpush1.msra.mxu0 0.0
          %438 = vmatprep.subr.mxu0 0.0
          %439 = vmatpush1.msra.mxu0 0.0
          %440 = vmatprep.subr.mxu0 0.0
          %441 = vmatpush1.msra.mxu0 0.0
          %442 = vmatprep.subr.mxu0 0.0
          %443 = vmatpush1.msra.mxu0 0.0
          %444 = vmatprep.subr.mxu0 0.0
          %445 = vmatpush1.msra.mxu0 0.0
          %446 = vmatprep.subr.mxu0 0.0
          %447 = vmatpush1.msra.mxu0 0.0
          %448 = vmatprep.subr.mxu0 0.0
          %449 = vmatpush1.msra.mxu0 0.0
          %450 = vmatprep.subr.mxu0 0.0
          %451 = vmatpush1.msra.mxu0 0.0
          %452 = vmatprep.subr.mxu0 0.0
          %453 = vmatpush1.msra.mxu0 0.0
          %454 = vmatprep.subr.mxu0 0.0
          %455 = vmatpush1.msra.mxu0 0.0
          %456 = vmatprep.subr.mxu0 0.0
          %457 = vmatpush1.msra.mxu0 0.0
          %458 = vmatprep.subr.mxu0 0.0
          %459 = vmatpush1.msra.mxu0 0.0
          %460 = vmatprep.subr.mxu0 0.0
          %461 = vmatpush1.msra.mxu0 0.0
          %462 = vmatprep.subr.mxu0 0.0
          %463 = vmatpush1.msra.mxu0 0.0
          %464 = vmatprep.subr.mxu0 0.0
          %465 = vmatpush1.msra.mxu0 0.0
          %466 = vmatprep.subr.mxu0 0.0
          %467 = vmatpush1.msra.mxu0 0.0
          %468 = vmatprep.mubr.f32.mxu0 0.0
          %469 = vmatmul.mubr.f32.gmra.mrb[0].mxu0 %v402
          %v470 = vpop.f32.mrb[0].mxu0
          %v471 = vadd.f32 %v400, %v470
          %v472 = vpop.f32.mrb[0].mxu0
          %473 = vdwg.mxu0
          %474 = vst [vmem:[#allocation2] sm:$0x1] %v471
        $region48: #{tpu_custom_call.1} parent=43 // pred_fallthru
          _
        %v475 = vld [vmem:[%s291] sm:$0xff]
        %v476 = vld [vmem:[%s291 + $0x8] sm:$0xff]
        %v477 = vld [vmem:[%s2] sm:$0xff]
        %v478 = vld [vmem:[%s3] sm:$0x1]
        %v480 = vlaneseq
        %v481 = vshrl.u32 %v480, 7
        %v482 = vsub.s32 0, %v481
        %v483 = vrot.slane %v478, %v482
        %vm485 = vcmask 64512
        %v487 = vsel %vm485, %v475, 0
        %v490 = vsel %vm485, %v476, 0
        %492 = vmatprep.subr.mxu0 0.0
        %493 = vmatpush1.msra.mxu0 %v477
        %494 = vmatprep.subr.mxu0 0.0
        %495 = vmatpush1.msra.mxu0 0.0
        %496 = vmatprep.subr.mxu0 0.0
        %497 = vmatpush1.msra.mxu0 0.0
        %498 = vmatprep.subr.mxu0 0.0
        %499 = vmatpush1.msra.mxu0 0.0
        %500 = vmatprep.subr.mxu0 0.0
        %501 = vmatpush1.msra.mxu0 0.0
        %502 = vmatprep.subr.mxu0 0.0
        %503 = vmatpush1.msra.mxu0 0.0
        %504 = vmatprep.subr.mxu0 0.0
        %505 = vmatpush1.msra.mxu0 0.0
        %506 = vmatprep.subr.mxu0 0.0
        %507 = vmatpush1.msra.mxu0 0.0
        %508 = vmatprep.subr.mxu0 0.0
        %509 = vmatpush1.msra.mxu0 0.0
        %510 = vmatprep.subr.mxu0 0.0
        %511 = vmatpush1.msra.mxu0 0.0
        %512 = vmatprep.subr.mxu0 0.0
        %513 = vmatpush1.msra.mxu0 0.0
        %514 = vmatprep.subr.mxu0 0.0
        %515 = vmatpush1.msra.mxu0 0.0
        %516 = vmatprep.subr.mxu0 0.0
        %517 = vmatpush1.msra.mxu0 0.0
        %518 = vmatprep.subr.mxu0 0.0
        %519 = vmatpush1.msra.mxu0 0.0
        %520 = vmatprep.subr.mxu0 0.0
        %521 = vmatpush1.msra.mxu0 0.0
        %522 = vmatprep.subr.mxu0 0.0
        %523 = vmatpush1.msra.mxu0 0.0
        %524 = vmatprep.subr.mxu0 0.0
        %525 = vmatpush1.msra.mxu0 0.0
        %526 = vmatprep.subr.mxu0 0.0
        %527 = vmatpush1.msra.mxu0 0.0
        %528 = vmatprep.subr.mxu0 0.0
        %529 = vmatpush1.msra.mxu0 0.0
        %530 = vmatprep.subr.mxu0 0.0
        %531 = vmatpush1.msra.mxu0 0.0
        %532 = vmatprep.subr.mxu0 0.0
        %533 = vmatpush1.msra.mxu0 0.0
        %534 = vmatprep.subr.mxu0 0.0
        %535 = vmatpush1.msra.mxu0 0.0
        %536 = vmatprep.subr.mxu0 0.0
        %537 = vmatpush1.msra.mxu0 0.0
        %538 = vmatprep.subr.mxu0 0.0
        %539 = vmatpush1.msra.mxu0 0.0
        %540 = vmatprep.subr.mxu0 0.0
        %541 = vmatpush1.msra.mxu0 0.0
        %542 = vmatprep.subr.mxu0 0.0
        %543 = vmatpush1.msra.mxu0 0.0
        %544 = vmatprep.subr.mxu0 0.0
        %545 = vmatpush1.msra.mxu0 0.0
        %546 = vmatprep.subr.mxu0 0.0
        %547 = vmatpush1.msra.mxu0 0.0
        %548 = vmatprep.subr.mxu0 0.0
        %549 = vmatpush1.msra.mxu0 0.0
        %550 = vmatprep.subr.mxu0 0.0
        %551 = vmatpush1.msra.mxu0 0.0
        %552 = vmatprep.subr.mxu0 0.0
        %553 = vmatpush1.msra.mxu0 0.0
        %554 = vmatprep.subr.mxu0 0.0
        %555 = vmatpush1.msra.mxu0 0.0
        %556 = vmatprep.mubr.f32.mxu0 0.0
        %557 = vmatmul.mubr.f32.gmra.mrb[0].mxu0 %v487
        %v558 = vpop.f32.mrb[0].mxu0
        %v559 = vadd.f32 %v483, %v558
        %v560 = vpop.f32.mrb[0].mxu0
        %561 = vmatprep.mubr.f32.mxu0 0.0
        %562 = vmatmul.mubr.f32.gmra.mrb[0].mxu0 %v490
        %v563 = vpop.f32.mrb[0].mxu0
        %v564 = vadd.f32 %v483, %v563
        %v565 = vpop.f32.mrb[0].mxu0
        %566 = vdwg.mxu0
        %v567 = vmax.f32 %v559, 0.0
        %v568 = vmax.f32 %v564, 0.0
        %v569 = vld [vmem:[%s4] sm:$0xff]
        %v570 = vld [vmem:[%s4 + $0x8] sm:$0xff]
        %v571 = vld [vmem:[%s4 + $0x10] sm:$0xff]
        %v572 = vld [vmem:[%s4 + $0x18] sm:$0xff]
        %v573 = vld [vmem:[#allocation2] sm:$0x1]
        %v575 = vlaneseq
        %v576 = vshrl.u32 %v575, 7
        %v577 = vsub.s32 0, %v576
        %v578 = vrot.slane %v573, %v577
        %vm580 = vcmask 261120
        %v582 = vsel %vm580, %v567, 0
        %v585 = vsel %vm580, %v568, 0
        %587 = vmatprep.subr.mxu0 0.0
        %588 = vmatpush1.msra.mxu0 %v569
        %589 = vmatprep.subr.mxu0 0.0
        %590 = vmatpush1.msra.mxu0 %v570
        %591 = vmatprep.subr.mxu0 0.0
        %592 = vmatpush1.msra.mxu0 %v571
        %593 = vmatprep.subr.mxu0 0.0
        %594 = vmatpush1.msra.mxu0 %v572
        %595 = vmatprep.subr.mxu0 0.0
        %596 = vmatpush1.msra.mxu0 0.0
        %597 = vmatprep.subr.mxu0 0.0
        %598 = vmatpush1.msra.mxu0 0.0
        %599 = vmatprep.subr.mxu0 0.0
        %600 = vmatpush1.msra.mxu0 0.0
        %601 = vmatprep.subr.mxu0 0.0
        %602 = vmatpush1.msra.mxu0 0.0
        %603 = vmatprep.subr.mxu0 0.0
        %604 = vmatpush1.msra.mxu0 0.0
        %605 = vmatprep.subr.mxu0 0.0
        %606 = vmatpush1.msra.mxu0 0.0
        %607 = vmatprep.subr.mxu0 0.0
        %608 = vmatpush1.msra.mxu0 0.0
        %609 = vmatprep.subr.mxu0 0.0
        %610 = vmatpush1.msra.mxu0 0.0
        %611 = vmatprep.subr.mxu0 0.0
        %612 = vmatpush1.msra.mxu0 0.0
        %613 = vmatprep.subr.mxu0 0.0
        %614 = vmatpush1.msra.mxu0 0.0
        %615 = vmatprep.subr.mxu0 0.0
        %616 = vmatpush1.msra.mxu0 0.0
        %617 = vmatprep.subr.mxu0 0.0
        %618 = vmatpush1.msra.mxu0 0.0
        %619 = vmatprep.subr.mxu0 0.0
        %620 = vmatpush1.msra.mxu0 0.0
        %621 = vmatprep.subr.mxu0 0.0
        %622 = vmatpush1.msra.mxu0 0.0
        %623 = vmatprep.subr.mxu0 0.0
        %624 = vmatpush1.msra.mxu0 0.0
        %625 = vmatprep.subr.mxu0 0.0
        %626 = vmatpush1.msra.mxu0 0.0
        %627 = vmatprep.subr.mxu0 0.0
        %628 = vmatpush1.msra.mxu0 0.0
        %629 = vmatprep.subr.mxu0 0.0
        %630 = vmatpush1.msra.mxu0 0.0
        %631 = vmatprep.subr.mxu0 0.0
        %632 = vmatpush1.msra.mxu0 0.0
        %633 = vmatprep.subr.mxu0 0.0
        %634 = vmatpush1.msra.mxu0 0.0
        %635 = vmatprep.subr.mxu0 0.0
        %636 = vmatpush1.msra.mxu0 0.0
        %637 = vmatprep.subr.mxu0 0.0
        %638 = vmatpush1.msra.mxu0 0.0
        %639 = vmatprep.subr.mxu0 0.0
        %640 = vmatpush1.msra.mxu0 0.0
        %641 = vmatprep.subr.mxu0 0.0
        %642 = vmatpush1.msra.mxu0 0.0
        %643 = vmatprep.subr.mxu0 0.0
        %644 = vmatpush1.msra.mxu0 0.0
        %645 = vmatprep.subr.mxu0 0.0
        %646 = vmatpush1.msra.mxu0 0.0
        %647 = vmatprep.subr.mxu0 0.0
        %648 = vmatpush1.msra.mxu0 0.0
        %649 = vmatprep.subr.mxu0 0.0
        %650 = vmatpush1.msra.mxu0 0.0
        %651 = vmatprep.mubr.f32.mxu0 0.0
        %652 = vmatmul.mubr.f32.gmra.mrb[0].mxu0 %v582
        %v653 = vpop.f32.mrb[0].mxu0
        %v654 = vadd.f32 %v578, %v653
        %v655 = vpop.f32.mrb[0].mxu0
        %656 = vmatprep.mubr.f32.mxu0 0.0
        %657 = vmatmul.mubr.f32.gmra.mrb[0].mxu0 %v585
        %v658 = vpop.f32.mrb[0].mxu0
        %v659 = vadd.f32 %v578, %v658
        %v660 = vpop.f32.mrb[0].mxu0
        %661 = vdwg.mxu0
        %662 = vst [vmem:[%s282] sm:$0xff] %v654
        %663 = vst [vmem:[%s282 + $0x8] sm:$0xff] %v659
        %s664 = sand.u32 %s180, 1
        %s665 = scalar_lea.sflag [#allocation4], %s664
        %s666 = sand.u32 %s180, 1
        %s667 = smul.addr %s666, 16
        %s668 = scalar_lea.vmem [#allocation3], %s667
        // Predicated region
        $region49: #{tpu_custom_call.1} parent=43 // pred_check
          %p669 = pneg %p190
        $region50: #{tpu_custom_call.1} parent=43 // pred_check_branch
          %671 = sbr.rel (%p669) target = $region52
        $region51: #{tpu_custom_call.1} parent=43 // pred_region
          %s672 = smul.u32 2, %s25
          %s674 = ssub.s32 256, 256
          %675 = vsyncadd %s665, %s674
          %s676 = smul.addr %s24, 2
          %s677 = sadd.s32 %s672, %s676
          %s678 = smul.addr %s677, 128
          %s679 = scalar_lea.hbm %s6, %s678
          %s680 = sshll.u32 %s668, 4
          %s681 = int_to_ptr.vmem [resolvable:$true] %s680
          %686 = dma.vmem_to_hbm [thread:$0]  %s681, 256, %s679, %s665, 128, 128, 8
        $region52: #{tpu_custom_call.1} parent=43 // pred_fallthru
          _
      $region44: #{tpu_custom_call.1} parent=5 // pred_fallthru
        _
      %p687 = scmp.le.s32.totalorder 2, %s15
      // Predicated region
      $region53: #{tpu_custom_call.1} parent=5 // pred_check
        %p688 = pneg %p687
      $region54: #{tpu_custom_call.1} parent=5 // pred_check_branch
        %690 = sbr.rel (%p688) target = $region56
      $region55: #{tpu_custom_call.1} parent=5 // pred_region
        %s691 = ssub.s32 %s15, 2
        // Predicated region
        $region57: #{tpu_custom_call.1} parent=55 // pred_check
          %p692 = pneg %p196
        $region58: #{tpu_custom_call.1} parent=55 // pred_check_branch
          %694 = sbr.rel (%p692) target = $region60
        $region59: #{tpu_custom_call.1} parent=55 // pred_region
          %s695 = sand.u32 %s181, 1
          %s696 = scalar_lea.sflag [#allocation4], %s695
          %s697 = sand.u32 %s181, 1
          %s698 = smul.addr %s697, 16
          %s699 = scalar_lea.vmem [#allocation3], %s698
          %700 = dma.done %s696, 256
        $region60: #{tpu_custom_call.1} parent=55 // pred_fallthru
          _
      $region56: #{tpu_custom_call.1} parent=5 // pred_fallthru
        _
    $region6: #{tpu_custom_call.1} parent=1 // loop_footer
      %s19 = sadd.s32 1, %s15
    $region7: #{tpu_custom_call.1} parent=1 // loop_footer_branch
      %14 = sbr.rel target = $region3
    $region8: #{tpu_custom_call.1} parent=1 // loop_exit
      _
    %701 = vsyncpa [#allocation4], 1
    %s702 = scalar_lea.sflag [#allocation4], 1
    %703 = vsyncpa %s702, 1

</llo_original>
